<compile_context>
chip_gen: v6e
topology: v6e:2x2x1
jax: 0.10.0
libtpu: 0.0.40
codegen_flags: <defaults>
</compile_context>

<pallas_src>
import functools

import jax
import jax.numpy as jnp
from jax import lax
from jax.experimental import pallas as pl
from jax.experimental.pallas import tpu as pltpu


# --------------------------- fast path kernel ---------------------------

def _seg_mean(v, s):
    """Per-channel-group mean of v (rows, 128) via block-diagonal matrix s.

    v is split into a bf16-exact hi part + f32 residual so the MXU result is
    accurate (~2^-18) even if f32 operands are truncated to bf16 internally.
    """
    v_hi = v.astype(jnp.bfloat16).astype(jnp.float32)
    v_lo = v - v_hi
    return (jnp.dot(v_hi, s, preferred_element_type=jnp.float32)
            + jnp.dot(v_lo, s, preferred_element_type=jnp.float32))


def _ln_packed_kernel(x_ref, s_ref, w_ref, b_ref, o_ref, *, eps):
    x = x_ref[...].astype(jnp.float32)          # (block_rows, 128) packed groups
    s = s_ref[...]                              # (128, 128) segment-mean matrix
    mu = _seg_mean(x, s)                        # group mean, broadcast over group lanes
    xc = x - mu
    var = _seg_mean(xc * xc, s)                 # biased variance (no cancellation)
    inv_sigma = lax.rsqrt(var + eps)            # EUP slot
    y = xc * inv_sigma * w_ref[...] + b_ref[...]   # (1,128) broadcast over rows
    o_ref[...] = y.astype(o_ref.dtype)


# --------------------------- fallback kernel ---------------------------

def _ln_transpose_kernel(x_ref, w_ref, b_ref, o_ref, *, eps):
    # x_ref: (block_cols, C) in the tensor's natural layout; transpose in-kernel
    # so the reduction runs over C sublanes and math/store stay lane-dense.
    x = jnp.transpose(x_ref[...].astype(jnp.float32))      # (C, block_cols)
    inv_c = 1.0 / x.shape[0]
    mu = jnp.sum(x, axis=0, keepdims=True) * inv_c
    xc = x - mu
    var = jnp.sum(xc * xc, axis=0, keepdims=True) * inv_c
    inv_sigma = lax.rsqrt(var + eps)
    y = xc * inv_sigma * w_ref[...] + b_ref[...]            # (C,1) lane-broadcast
    o_ref[...] = y.astype(o_ref.dtype)


# ------------------------------ wrapper ------------------------------

def layernorm_with_bias(x, weight, bias, *, eps=1e-5, block_rows=None, block_cols=None):
    """LayerNorm over the last dim of `x` with affine weight/bias of shape (C,)."""
    orig_shape = x.shape
    C = orig_shape[-1]
    R = 1
    for d in orig_shape[:-1]:
        R *= d
    total = R * C
    itemsize = x.dtype.itemsize
    w32 = weight.astype(jnp.float32)
    b32 = bias.astype(jnp.float32)

    params = pltpu.CompilerParams(
        dimension_semantics=("parallel",),
        vmem_limit_bytes=32 * 1024 * 1024,   # double-buffered ~4MiB tiles fit all gens
    )

    if 128 % C == 0 and total % 128 == 0:
        # ---------------- packed fast path: zero wrapper relayout ----------------
        n_rows = total // 128
        if block_rows is None:
            block_rows = max(8, (4 * 1024 * 1024) // (128 * itemsize))   # ~4 MiB/tile
        block_rows = min(block_rows, n_rows)
        if block_rows != n_rows:
            block_rows = max(8, (block_rows // 8) * 8)

        xp = x.reshape(n_rows, 128)            # free row-major reshape, no copy
        lane = jnp.arange(128)
        seg = jnp.where((lane[:, None] // C) == (lane[None, :] // C),
                        1.0 / C, 0.0).astype(jnp.float32)                # (128,128)
        wt = jnp.tile(w32, 128 // C).reshape(1, 128)
        bt = jnp.tile(b32, 128 // C).reshape(1, 128)

        out = pl.pallas_call(
            functools.partial(_ln_packed_kernel, eps=eps),
            out_shape=jax.ShapeDtypeStruct((n_rows, 128), x.dtype),
            grid=(pl.cdiv(n_rows, block_rows),),   # ragged tail masked by Pallas
            in_specs=[
                pl.BlockSpec((block_rows, 128), lambda i: (i, 0)),
                pl.BlockSpec((128, 128), lambda i: (0, 0)),
                pl.BlockSpec((1, 128), lambda i: (0, 0)),
                pl.BlockSpec((1, 128), lambda i: (0, 0)),
            ],
            out_specs=pl.BlockSpec((block_rows, 128), lambda i: (i, 0)),
            compiler_params=params,
        )(xp, seg, wt, bt)
        return out.reshape(orig_shape)         # free reshape back

    # ---------------- fallback: C does not divide 128 ----------------
    x2 = x.reshape(R, C)                       # free reshape
    if block_cols is None:
        block_cols = max(128, (2 * 1024 * 1024) // max(1, C * itemsize))
    block_cols = min(block_cols, R)
    if block_cols != R:
        block_cols = max(128, (block_cols // 128) * 128)

    out_t = pl.pallas_call(
        functools.partial(_ln_transpose_kernel, eps=eps),
        out_shape=jax.ShapeDtypeStruct((C, R), x.dtype),
        grid=(pl.cdiv(R, block_cols),),        # ragged tail masked by Pallas
        in_specs=[
            pl.BlockSpec((block_cols, C), lambda i: (i, 0)),
            pl.BlockSpec((C, 1), lambda i: (0, 0)),
            pl.BlockSpec((C, 1), lambda i: (0, 0)),
        ],
        out_specs=pl.BlockSpec((C, block_cols), lambda i: (0, i)),
        compiler_params=params,
    )(x2, w32.reshape(C, 1), b32.reshape(C, 1))
    # TODO(synk): this single output-side transpose is the only remaining relayout;
    # channel counts that divide 128 take the fully zero-copy packed path above.
    return out_t.T.reshape(orig_shape)


# ------------------------ reference (matches PyTorch) ------------------------

def layernorm_ref(x, weight, bias, eps=1e-5):
    mu = jnp.mean(x, axis=-1, keepdims=True)
    var = jnp.mean((x - mu) ** 2, axis=-1, keepdims=True)   # unbiased=False
    return (x - mu) / jnp.sqrt(var + eps) * weight + bias


# --------------------------------- main ---------------------------------

if __name__ == "__main__":
    key = jax.random.PRNGKey(0)
    kx, kw, kb, kx2 = jax.random.split(key, 4)

    # Restormer-style usage: LayerNorm over C channels of a flattened 16x16 map.
    B, N, C = 2, 256, 4                                    # x: (batch, H*W, dim)
    x = jax.random.normal(kx, (B, N, C), jnp.float32)
    weight = jnp.ones((C,), jnp.float32) + 0.1 * jax.random.normal(kw, (C,), jnp.float32)
    bias = 0.1 * jax.random.normal(kb, (C,), jnp.float32)

    out = jax.block_until_ready(layernorm_with_bias(x, weight, bias))
    ref = layernorm_ref(x, weight, bias)
    if not jnp.allclose(out, ref, atol=1e-4, rtol=1e-4):
        raise AssertionError(
            f"fast path mismatch (max abs err {jnp.max(jnp.abs(out - ref))})")

    # Second check: multi-step grid with a ragged final block on the packed path.
    C2 = 8
    x2 = jax.random.normal(kx2, (3, 976, C2), jnp.float32)   # 183 packed rows
    w2 = jnp.full((C2,), 0.9, jnp.float32)
    b2 = jnp.full((C2,), 0.05, jnp.float32)
    out2 = jax.block_until_ready(layernorm_with_bias(x2, w2, b2, block_rows=64))
    ref2 = layernorm_ref(x2, w2, b2)
    if not jnp.allclose(out2, ref2, atol=1e-4, rtol=1e-4):
        raise AssertionError(
            f"ragged-grid mismatch (max abs err {jnp.max(jnp.abs(out2 - ref2))})")

    print("KERNEL_OK")
</pallas_src>

<mosaic_0001>
module attributes {stable_mosaic.version = 11 : i64} {
  func.func @_ln_packed_kernel(%arg0: i32, %arg1: memref<16x128xf32, #tpu.memory_space<vmem>>, %arg2: memref<128x128xf32, #tpu.memory_space<vmem>>, %arg3: memref<1x128xf32, #tpu.memory_space<vmem>>, %arg4: memref<1x128xf32, #tpu.memory_space<vmem>>, %arg5: memref<16x128xf32, #tpu.memory_space<vmem>>) attributes {dimension_semantics = [#tpu.dimension_semantics<parallel>], iteration_bounds = array<i64: 1>, scalar_prefetch = 0 : i64, scratch_operands = 0 : i64, tpu.core_type = #tpu.core_type<tc>, window_params = [{transform_indices = @transform_0, window_bounds = array<i64: 16, 128>}, {pipeline_mode = #tpu.pipeline_mode<synchronous>, transform_indices = @transform_1, window_bounds = array<i64: 128, 128>}, {pipeline_mode = #tpu.pipeline_mode<synchronous>, transform_indices = @transform_2, window_bounds = array<i64: 1, 128>}, {pipeline_mode = #tpu.pipeline_mode<synchronous>, transform_indices = @transform_3, window_bounds = array<i64: 1, 128>}, {transform_indices = @transform_4, window_bounds = array<i64: 16, 128>}]} {
    %c0 = arith.constant 0 : index
    %c0_0 = arith.constant 0 : index
    %0 = vector.load %arg1[%c0, %c0_0] : memref<16x128xf32, #tpu.memory_space<vmem>>, vector<16x128xf32>
    %c0_1 = arith.constant 0 : index
    %c0_2 = arith.constant 0 : index
    %1 = vector.load %arg2[%c0_1, %c0_2] : memref<128x128xf32, #tpu.memory_space<vmem>>, vector<128x128xf32>
    %2 = arith.truncf %0 : vector<16x128xf32> to vector<16x128xbf16>
    %3 = arith.extf %2 : vector<16x128xbf16> to vector<16x128xf32>
    %4 = arith.subf %0, %3 : vector<16x128xf32>
    %cst = arith.constant dense<0.000000e+00> : vector<16x128xf32>
    %5 = tpu.matmul %3, %1, %cst {dimension_numbers = #tpu.dot_dimension_numbers<[1], [0], [0], [1], [0, 0, 1, 1], [], []>} : vector<16x128xf32>, vector<128x128xf32>, vector<16x128xf32> -> vector<16x128xf32>
    %cst_3 = arith.constant dense<0.000000e+00> : vector<16x128xf32>
    %6 = tpu.matmul %4, %1, %cst_3 {dimension_numbers = #tpu.dot_dimension_numbers<[1], [0], [0], [1], [0, 0, 1, 1], [], []>} : vector<16x128xf32>, vector<128x128xf32>, vector<16x128xf32> -> vector<16x128xf32>
    %7 = arith.addf %5, %6 : vector<16x128xf32>
    %8 = arith.subf %0, %7 : vector<16x128xf32>
    %9 = arith.mulf %8, %8 : vector<16x128xf32>
    %10 = arith.truncf %9 : vector<16x128xf32> to vector<16x128xbf16>
    %11 = arith.extf %10 : vector<16x128xbf16> to vector<16x128xf32>
    %12 = arith.subf %9, %11 : vector<16x128xf32>
    %cst_4 = arith.constant dense<0.000000e+00> : vector<16x128xf32>
    %13 = tpu.matmul %11, %1, %cst_4 {dimension_numbers = #tpu.dot_dimension_numbers<[1], [0], [0], [1], [0, 0, 1, 1], [], []>} : vector<16x128xf32>, vector<128x128xf32>, vector<16x128xf32> -> vector<16x128xf32>
    %cst_5 = arith.constant dense<0.000000e+00> : vector<16x128xf32>
    %14 = tpu.matmul %12, %1, %cst_5 {dimension_numbers = #tpu.dot_dimension_numbers<[1], [0], [0], [1], [0, 0, 1, 1], [], []>} : vector<16x128xf32>, vector<128x128xf32>, vector<16x128xf32> -> vector<16x128xf32>
    %15 = arith.addf %13, %14 : vector<16x128xf32>
    %cst_6 = arith.constant 9.99999974E-6 : f32
    %16 = vector.broadcast %cst_6 : f32 to vector<16x128xf32>
    %17 = arith.addf %15, %16 : vector<16x128xf32>
    %18 = math.rsqrt %17 : vector<16x128xf32>
    %19 = arith.mulf %8, %18 : vector<16x128xf32>
    %c0_7 = arith.constant 0 : index
    %c0_8 = arith.constant 0 : index
    %20 = vector.load %arg3[%c0_7, %c0_8] : memref<1x128xf32, #tpu.memory_space<vmem>>, vector<1x128xf32>
    %21 = vector.broadcast %20 : vector<1x128xf32> to vector<16x128xf32>
    %22 = arith.mulf %19, %21 : vector<16x128xf32>
    %c0_9 = arith.constant 0 : index
    %c0_10 = arith.constant 0 : index
    %23 = vector.load %arg4[%c0_9, %c0_10] : memref<1x128xf32, #tpu.memory_space<vmem>>, vector<1x128xf32>
    %24 = vector.broadcast %23 : vector<1x128xf32> to vector<16x128xf32>
    %25 = arith.addf %22, %24 : vector<16x128xf32>
    %c0_11 = arith.constant 0 : index
    %c0_12 = arith.constant 0 : index
    %26 = vector.load %arg5[%c0_11, %c0_12] : memref<16x128xf32, #tpu.memory_space<vmem>>, vector<16x128xf32>
    tpu.vector_store %arg5[%c0_11, %c0_12], %25 {strides = array<i32>} : memref<16x128xf32, #tpu.memory_space<vmem>>, vector<16x128xf32>,
    return
  }
  func.func @transform_0(%arg0: i32) -> (i32, i32) {
    %c0_i32 = arith.constant 0 : i32
    %c0_i32_0 = arith.constant 0 : i32
    return %arg0, %c0_i32 : i32, i32
  }
  func.func @transform_1(%arg0: i32) -> (i32, i32) {
    %c0_i32 = arith.constant 0 : i32
    %c0_i32_0 = arith.constant 0 : i32
    %c0_i32_1 = arith.constant 0 : i32
    return %c0_i32, %c0_i32_0 : i32, i32
  }
  func.func @transform_2(%arg0: i32) -> (i32, i32) {
    %c0_i32 = arith.constant 0 : i32
    %c0_i32_0 = arith.constant 0 : i32
    %c0_i32_1 = arith.constant 0 : i32
    return %c0_i32, %c0_i32_0 : i32, i32
  }
  func.func @transform_3(%arg0: i32) -> (i32, i32) {
    %c0_i32 = arith.constant 0 : i32
    %c0_i32_0 = arith.constant 0 : i32
    %c0_i32_1 = arith.constant 0 : i32
    return %c0_i32, %c0_i32_0 : i32, i32
  }
  func.func @transform_4(%arg0: i32) -> (i32, i32) {
    %c0_i32 = arith.constant 0 : i32
    %c0_i32_0 = arith.constant 0 : i32
    return %arg0, %c0_i32 : i32, i32
  }
}

</mosaic_0001>

<llo_original>
// kernel: tpu_custom_call.1
$region0: #{tpu_custom_call.1}
  #allocation0 [shape = 'u32[]', space=smem, size = 0x4, offset = 0x4, fixed_abs, tag = 'smem constant byte address 0x4 - core index']
  #allocation1 [shape = 'u32[144,128]{1,0:T(1,128)}', space=vmem, size = 0x12000, scoped, tag = 'internal scratch']
  %s0 = inlined_call_operand.hbm [shape: f32[16,128], index: 0, kind: input, shape index: {}]
  %s1 = inlined_call_operand.hbm [shape: f32[128,128], index: 1, kind: input, shape index: {}]
  %s2 = inlined_call_operand.vmem [shape: f32[1,128], index: 2, kind: input, shape index: {}]
  %s3 = inlined_call_operand.vmem [shape: f32[1,128], index: 3, kind: input, shape index: {}]
  %s4 = inlined_call_operand.hbm [shape: f32[16,128], index: 4, kind: output, shape index: {}]
  %s5 = sld [smem:[#allocation0]]
  $region34: #{tpu_custom_call.1} parent=0
    _
  %s7 = ssub.s32 1, %s5
  %s8 = scalar_select 0, %s7, %s5
  $region1: #{tpu_custom_call.1} parent=0
    #allocation2 [shape = 'u8[8192]{0}', space=vmem, size = 0x2000, scoped, tag = 'input window, operand 0, single buffered']
    #allocation3 [shape = 's32[1]{0}', space=sflag, size = 0x4, scoped, tag = 'scoped memory for tpu_custom_call.1']
    #allocation4 [shape = 's32[1]{0}', space=sflag, size = 0x4, scoped, tag = 'scoped memory for tpu_custom_call.1']
    #allocation5 [shape = 'u8[65536]{0}', space=vmem, size = 0x10000, scoped, tag = 'input window, operand 1, single buffered']
    #allocation6 [shape = 's32[1]{0}', space=sflag, size = 0x4, scoped, tag = 'scoped memory for tpu_custom_call.1']
    #allocation7 [shape = 'u8[8192]{0}', space=vmem, size = 0x2000, scoped, tag = 'output window, operand 0, single buffered']
    %9 = vsyncpa [#allocation3], 0
    %10 = vsyncpa [#allocation6], 0
    %11 = vsyncpa [#allocation4], 0
    // Predicated region
    $region2: #{tpu_custom_call.1} parent=1 // pred_check
      _
    $region3: #{tpu_custom_call.1} parent=1 // pred_check_branch
      %13 = sbr.rel (0) target = $region5
    $region4: #{tpu_custom_call.1} parent=1 // pred_region
      %s15 = ssub.s32 256, 256
      %16 = vsyncadd [#allocation3], %s15
      %s17 = sshll.u32 [#allocation2], 4
      %s18 = int_to_ptr.vmem [resolvable:$true] %s17
      %23 = dma.hbm_to_vmem [thread:$0]  %s0, 256, %s18, [#allocation3], 128, 128, 8
    $region5: #{tpu_custom_call.1} parent=1 // pred_fallthru
      _
    // Predicated region
    $region6: #{tpu_custom_call.1} parent=1 // pred_check
      _
    $region7: #{tpu_custom_call.1} parent=1 // pred_check_branch
      %25 = sbr.rel (0) target = $region9
    $region8: #{tpu_custom_call.1} parent=1 // pred_region
      %s27 = ssub.s32 2048, 2048
      %28 = vsyncadd [#allocation6], %s27
      %s29 = sshll.u32 [#allocation5], 4
      %s30 = int_to_ptr.vmem [resolvable:$true] %s29
      %35 = dma.hbm_to_vmem [thread:$0]  %s1, 2048, %s30, [#allocation6], 128, 128, 8
    $region9: #{tpu_custom_call.1} parent=1 // pred_fallthru
      _
    // Predicated region
    $region10: #{tpu_custom_call.1} parent=1 // pred_check
      _
    $region11: #{tpu_custom_call.1} parent=1 // pred_check_branch
      %37 = sbr.rel (0) target = $region13
    $region12: #{tpu_custom_call.1} parent=1 // pred_region
      _
    $region13: #{tpu_custom_call.1} parent=1 // pred_fallthru
      _
    // Predicated region
    $region14: #{tpu_custom_call.1} parent=1 // pred_check
      _
    $region15: #{tpu_custom_call.1} parent=1 // pred_check_branch
      %39 = sbr.rel (0) target = $region17
    $region16: #{tpu_custom_call.1} parent=1 // pred_region
      _
    $region17: #{tpu_custom_call.1} parent=1 // pred_fallthru
      _
    // Predicated region
    $region18: #{tpu_custom_call.1} parent=1 // pred_check
      _
    $region19: #{tpu_custom_call.1} parent=1 // pred_check_branch
      %41 = sbr.rel (0) target = $region21
    $region20: #{tpu_custom_call.1} parent=1 // pred_region
      %42 = dma.done [#allocation3], 256
    $region21: #{tpu_custom_call.1} parent=1 // pred_fallthru
      _
    // Predicated region
    $region22: #{tpu_custom_call.1} parent=1 // pred_check
      _
    $region23: #{tpu_custom_call.1} parent=1 // pred_check_branch
      %44 = sbr.rel (0) target = $region25
    $region24: #{tpu_custom_call.1} parent=1 // pred_region
      %45 = dma.done [#allocation6], 2048
    $region25: #{tpu_custom_call.1} parent=1 // pred_fallthru
      _
    %v46 = vld [vmem:[#allocation2] sm:$0xff]
    %v47 = vld [vmem:[#allocation2 + $0x8] sm:$0xff]
    %v48 = vld [vmem:[#allocation5] sm:$0xff]
    %v49 = vld [vmem:[#allocation5 + $0x8] sm:$0xff]
    %v50 = vld [vmem:[#allocation5 + $0x10] sm:$0xff]
    %v51 = vld [vmem:[#allocation5 + $0x18] sm:$0xff]
    %v52 = vld [vmem:[#allocation5 + $0x20] sm:$0xff]
    %v53 = vld [vmem:[#allocation5 + $0x28] sm:$0xff]
    %v54 = vld [vmem:[#allocation5 + $0x30] sm:$0xff]
    %v55 = vld [vmem:[#allocation5 + $0x38] sm:$0xff]
    %v56 = vld [vmem:[#allocation5 + $0x40] sm:$0xff]
    %v57 = vld [vmem:[#allocation5 + $0x48] sm:$0xff]
    %v58 = vld [vmem:[#allocation5 + $0x50] sm:$0xff]
    %v59 = vld [vmem:[#allocation5 + $0x58] sm:$0xff]
    %v60 = vld [vmem:[#allocation5 + $0x60] sm:$0xff]
    %v61 = vld [vmem:[#allocation5 + $0x68] sm:$0xff]
    %v62 = vld [vmem:[#allocation5 + $0x70] sm:$0xff]
    %v63 = vld [vmem:[#allocation5 + $0x78] sm:$0xff]
    %v64 = vpack.c.bf16 %v47, %v46
    %v65 = vunpack.c.l.bf16 %v64
    %v66 = vunpack.c.h.bf16 %v64
    %v67 = vsub.f32 %v46, %v65
    %v68 = vsub.f32 %v47, %v66
    %69 = vmatprep.subr.mxu0 0.0
    %70 = vmatpush1.msra.mxu0 %v63
    %71 = vmatprep.subr.mxu0 0.0
    %72 = vmatpush1.msra.mxu0 %v62
    %73 = vmatprep.subr.mxu0 0.0
    %74 = vmatpush1.msra.mxu0 %v61
    %75 = vmatprep.subr.mxu0 0.0
    %76 = vmatpush1.msra.mxu0 %v60
    %77 = vmatprep.subr.mxu0 0.0
    %78 = vmatpush1.msra.mxu0 %v59
    %79 = vmatprep.subr.mxu0 0.0
    %80 = vmatpush1.msra.mxu0 %v58
    %81 = vmatprep.subr.mxu0 0.0
    %82 = vmatpush1.msra.mxu0 %v57
    %83 = vmatprep.subr.mxu0 0.0
    %84 = vmatpush1.msra.mxu0 %v56
    %85 = vmatprep.subr.mxu0 0.0
    %86 = vmatpush1.msra.mxu0 %v55
    %87 = vmatprep.subr.mxu0 0.0
    %88 = vmatpush1.msra.mxu0 %v54
    %89 = vmatprep.subr.mxu0 0.0
    %90 = vmatpush1.msra.mxu0 %v53
    %91 = vmatprep.subr.mxu0 0.0
    %92 = vmatpush1.msra.mxu0 %v52
    %93 = vmatprep.subr.mxu0 0.0
    %94 = vmatpush1.msra.mxu0 %v51
    %95 = vmatprep.subr.mxu0 0.0
    %96 = vmatpush1.msra.mxu0 %v50
    %97 = vmatprep.subr.mxu0 0.0
    %98 = vmatpush1.msra.mxu0 %v49
    %99 = vmatprep.subr.mxu0 0.0
    %100 = vmatpush1.msra.mxu0 %v48
    %101 = vmatprep.subr.mxu0 0.0
    %102 = vmatpush2.msra.mxu0 0.0
    %103 = vmatprep.subr.mxu0 0.0
    %104 = vmatpush2.msra.mxu0 0.0
    %105 = vmatprep.subr.mxu0 0.0
    %106 = vmatpush2.msra.mxu0 0.0
    %107 = vmatprep.subr.mxu0 0.0
    %108 = vmatpush2.msra.mxu0 0.0
    %109 = vmatprep.subr.mxu0 0.0
    %110 = vmatpush2.msra.mxu0 0.0
    %111 = vmatprep.subr.mxu0 0.0
    %112 = vmatpush2.msra.mxu0 0.0
    %113 = vmatprep.subr.mxu0 0.0
    %114 = vmatpush2.msra.mxu0 0.0
    %115 = vmatprep.subr.mxu0 0.0
    %116 = vmatpush2.msra.mxu0 0.0
    %117 = vmatprep.subr.mxu0 0.0
    %118 = vmatpush2.msra.mxu0 0.0
    %119 = vmatprep.subr.mxu0 0.0
    %120 = vmatpush2.msra.mxu0 0.0
    %121 = vmatprep.subr.mxu0 0.0
    %122 = vmatpush2.msra.mxu0 0.0
    %123 = vmatprep.subr.mxu0 0.0
    %124 = vmatpush2.msra.mxu0 0.0
    %125 = vmatprep.subr.mxu0 0.0
    %126 = vmatpush2.msra.mxu0 0.0
    %127 = vmatprep.subr.mxu0 0.0
    %128 = vmatpush2.msra.mxu0 0.0
    %129 = vmatprep.subr.mxu0 0.0
    %130 = vmatpush2.msra.mxu0 0.0
    %131 = vmatprep.subr.mxu0 0.0
    %132 = vmatpush2.msra.mxu0 0.0
    %133 = vmatprep.mubr.f32.mxu0 0.0
    %134 = vmatmul.mubr.f32.gmra.mxu0 %v67
    %v135 = vpop.f32.mrf.mxu0
    %v136 = vadd.f32 0.0, %v135
    %v137 = vpop.f32.mrf.mxu0
    %138 = vmatprep.mubr.f32.mxu0 0.0
    %139 = vmatmul.mubr.f32.gmra.mxu0 %v68
    %v140 = vpop.f32.mrf.mxu0
    %v141 = vadd.f32 0.0, %v140
    %v142 = vpop.f32.mrf.mxu0
    %143 = vdwg.mxu0
    %144 = vmatprep.subr.mxu0 0.0
    %145 = vmatpush1.msra.mxu0 %v63
    %146 = vmatprep.subr.mxu0 0.0
    %147 = vmatpush1.msra.mxu0 %v62
    %148 = vmatprep.subr.mxu0 0.0
    %149 = vmatpush1.msra.mxu0 %v61
    %150 = vmatprep.subr.mxu0 0.0
    %151 = vmatpush1.msra.mxu0 %v60
    %152 = vmatprep.subr.mxu0 0.0
    %153 = vmatpush1.msra.mxu0 %v59
    %154 = vmatprep.subr.mxu0 0.0
    %155 = vmatpush1.msra.mxu0 %v58
    %156 = vmatprep.subr.mxu0 0.0
    %157 = vmatpush1.msra.mxu0 %v57
    %158 = vmatprep.subr.mxu0 0.0
    %159 = vmatpush1.msra.mxu0 %v56
    %160 = vmatprep.subr.mxu0 0.0
    %161 = vmatpush1.msra.mxu0 %v55
    %162 = vmatprep.subr.mxu0 0.0
    %163 = vmatpush1.msra.mxu0 %v54
    %164 = vmatprep.subr.mxu0 0.0
    %165 = vmatpush1.msra.mxu0 %v53
    %166 = vmatprep.subr.mxu0 0.0
    %167 = vmatpush1.msra.mxu0 %v52
    %168 = vmatprep.subr.mxu0 0.0
    %169 = vmatpush1.msra.mxu0 %v51
    %170 = vmatprep.subr.mxu0 0.0
    %171 = vmatpush1.msra.mxu0 %v50
    %172 = vmatprep.subr.mxu0 0.0
    %173 = vmatpush1.msra.mxu0 %v49
    %174 = vmatprep.subr.mxu0 0.0
    %175 = vmatpush1.msra.mxu0 %v48
    %176 = vmatprep.subr.mxu0 0.0
    %177 = vmatpush2.msra.mxu0 0.0
    %178 = vmatprep.subr.mxu0 0.0
    %179 = vmatpush2.msra.mxu0 0.0
    %180 = vmatprep.subr.mxu0 0.0
    %181 = vmatpush2.msra.mxu0 0.0
    %182 = vmatprep.subr.mxu0 0.0
    %183 = vmatpush2.msra.mxu0 0.0
    %184 = vmatprep.subr.mxu0 0.0
    %185 = vmatpush2.msra.mxu0 0.0
    %186 = vmatprep.subr.mxu0 0.0
    %187 = vmatpush2.msra.mxu0 0.0
    %188 = vmatprep.subr.mxu0 0.0
    %189 = vmatpush2.msra.mxu0 0.0
    %190 = vmatprep.subr.mxu0 0.0
    %191 = vmatpush2.msra.mxu0 0.0
    %192 = vmatprep.subr.mxu0 0.0
    %193 = vmatpush2.msra.mxu0 0.0
    %194 = vmatprep.subr.mxu0 0.0
    %195 = vmatpush2.msra.mxu0 0.0
    %196 = vmatprep.subr.mxu0 0.0
    %197 = vmatpush2.msra.mxu0 0.0
    %198 = vmatprep.subr.mxu0 0.0
    %199 = vmatpush2.msra.mxu0 0.0
    %200 = vmatprep.subr.mxu0 0.0
    %201 = vmatpush2.msra.mxu0 0.0
    %202 = vmatprep.subr.mxu0 0.0
    %203 = vmatpush2.msra.mxu0 0.0
    %204 = vmatprep.subr.mxu0 0.0
    %205 = vmatpush2.msra.mxu0 0.0
    %206 = vmatprep.subr.mxu0 0.0
    %207 = vmatpush2.msra.mxu0 0.0
    %208 = vmatprep.mubr.f32.mxu0 0.0
    %209 = vmatmul.mubr.f32.gmra.mxu0 %v65
    %v210 = vpop.f32.mrf.mxu0
    %v211 = vadd.f32 %v136, %v210
    %v212 = vpop.f32.mrf.mxu0
    %213 = vmatprep.mubr.f32.mxu0 0.0
    %214 = vmatmul.mubr.f32.gmra.mxu0 %v66
    %v215 = vpop.f32.mrf.mxu0
    %v216 = vadd.f32 %v141, %v215
    %v217 = vpop.f32.mrf.mxu0
    %218 = vdwg.mxu0
    %v219 = vsub.f32 %v46, %v211
    %v220 = vsub.f32 %v47, %v216
    %v221 = vmul.f32 %v219, %v219
    %v222 = vmul.f32 %v220, %v220
    %v223 = vpack.c.bf16 %v222, %v221
    %v224 = vunpack.c.l.bf16 %v223
    %v225 = vunpack.c.h.bf16 %v223
    %v226 = vsub.f32 %v221, %v224
    %v227 = vsub.f32 %v222, %v225
    %228 = vmatprep.subr.mxu0 0.0
    %229 = vmatpush1.msra.mxu0 %v63
    %230 = vmatprep.subr.mxu0 0.0
    %231 = vmatpush1.msra.mxu0 %v62
    %232 = vmatprep.subr.mxu0 0.0
    %233 = vmatpush1.msra.mxu0 %v61
    %234 = vmatprep.subr.mxu0 0.0
    %235 = vmatpush1.msra.mxu0 %v60
    %236 = vmatprep.subr.mxu0 0.0
    %237 = vmatpush1.msra.mxu0 %v59
    %238 = vmatprep.subr.mxu0 0.0
    %239 = vmatpush1.msra.mxu0 %v58
    %240 = vmatprep.subr.mxu0 0.0
    %241 = vmatpush1.msra.mxu0 %v57
    %242 = vmatprep.subr.mxu0 0.0
    %243 = vmatpush1.msra.mxu0 %v56
    %244 = vmatprep.subr.mxu0 0.0
    %245 = vmatpush1.msra.mxu0 %v55
    %246 = vmatprep.subr.mxu0 0.0
    %247 = vmatpush1.msra.mxu0 %v54
    %248 = vmatprep.subr.mxu0 0.0
    %249 = vmatpush1.msra.mxu0 %v53
    %250 = vmatprep.subr.mxu0 0.0
    %251 = vmatpush1.msra.mxu0 %v52
    %252 = vmatprep.subr.mxu0 0.0
    %253 = vmatpush1.msra.mxu0 %v51
    %254 = vmatprep.subr.mxu0 0.0
    %255 = vmatpush1.msra.mxu0 %v50
    %256 = vmatprep.subr.mxu0 0.0
    %257 = vmatpush1.msra.mxu0 %v49
    %258 = vmatprep.subr.mxu0 0.0
    %259 = vmatpush1.msra.mxu0 %v48
    %260 = vmatprep.subr.mxu0 0.0
    %261 = vmatpush2.msra.mxu0 0.0
    %262 = vmatprep.subr.mxu0 0.0
    %263 = vmatpush2.msra.mxu0 0.0
    %264 = vmatprep.subr.mxu0 0.0
    %265 = vmatpush2.msra.mxu0 0.0
    %266 = vmatprep.subr.mxu0 0.0
    %267 = vmatpush2.msra.mxu0 0.0
    %268 = vmatprep.subr.mxu0 0.0
    %269 = vmatpush2.msra.mxu0 0.0
    %270 = vmatprep.subr.mxu0 0.0
    %271 = vmatpush2.msra.mxu0 0.0
    %272 = vmatprep.subr.mxu0 0.0
    %273 = vmatpush2.msra.mxu0 0.0
    %274 = vmatprep.subr.mxu0 0.0
    %275 = vmatpush2.msra.mxu0 0.0
    %276 = vmatprep.subr.mxu0 0.0
    %277 = vmatpush2.msra.mxu0 0.0
    %278 = vmatprep.subr.mxu0 0.0
    %279 = vmatpush2.msra.mxu0 0.0
    %280 = vmatprep.subr.mxu0 0.0
    %281 = vmatpush2.msra.mxu0 0.0
    %282 = vmatprep.subr.mxu0 0.0
    %283 = vmatpush2.msra.mxu0 0.0
    %284 = vmatprep.subr.mxu0 0.0
    %285 = vmatpush2.msra.mxu0 0.0
    %286 = vmatprep.subr.mxu0 0.0
    %287 = vmatpush2.msra.mxu0 0.0
    %288 = vmatprep.subr.mxu0 0.0
    %289 = vmatpush2.msra.mxu0 0.0
    %290 = vmatprep.subr.mxu0 0.0
    %291 = vmatpush2.msra.mxu0 0.0
    %292 = vmatprep.mubr.f32.mxu0 0.0
    %293 = vmatmul.mubr.f32.gmra.mxu0 %v226
    %v294 = vpop.f32.mrf.mxu0
    %v295 = vadd.f32 0.0, %v294
    %v296 = vpop.f32.mrf.mxu0
    %297 = vmatprep.mubr.f32.mxu0 0.0
    %298 = vmatmul.mubr.f32.gmra.mxu0 %v227
    %v299 = vpop.f32.mrf.mxu0
    %v300 = vadd.f32 0.0, %v299
    %v301 = vpop.f32.mrf.mxu0
    %302 = vdwg.mxu0
    %303 = vmatprep.subr.mxu0 0.0
    %304 = vmatpush1.msra.mxu0 %v63
    %305 = vmatprep.subr.mxu0 0.0
    %306 = vmatpush1.msra.mxu0 %v62
    %307 = vmatprep.subr.mxu0 0.0
    %308 = vmatpush1.msra.mxu0 %v61
    %309 = vmatprep.subr.mxu0 0.0
    %310 = vmatpush1.msra.mxu0 %v60
    %311 = vmatprep.subr.mxu0 0.0
    %312 = vmatpush1.msra.mxu0 %v59
    %313 = vmatprep.subr.mxu0 0.0
    %314 = vmatpush1.msra.mxu0 %v58
    %315 = vmatprep.subr.mxu0 0.0
    %316 = vmatpush1.msra.mxu0 %v57
    %317 = vmatprep.subr.mxu0 0.0
    %318 = vmatpush1.msra.mxu0 %v56
    %319 = vmatprep.subr.mxu0 0.0
    %320 = vmatpush1.msra.mxu0 %v55
    %321 = vmatprep.subr.mxu0 0.0
    %322 = vmatpush1.msra.mxu0 %v54
    %323 = vmatprep.subr.mxu0 0.0
    %324 = vmatpush1.msra.mxu0 %v53
    %325 = vmatprep.subr.mxu0 0.0
    %326 = vmatpush1.msra.mxu0 %v52
    %327 = vmatprep.subr.mxu0 0.0
    %328 = vmatpush1.msra.mxu0 %v51
    %329 = vmatprep.subr.mxu0 0.0
    %330 = vmatpush1.msra.mxu0 %v50
    %331 = vmatprep.subr.mxu0 0.0
    %332 = vmatpush1.msra.mxu0 %v49
    %333 = vmatprep.subr.mxu0 0.0
    %334 = vmatpush1.msra.mxu0 %v48
    %335 = vmatprep.subr.mxu0 0.0
    %336 = vmatpush2.msra.mxu0 0.0
    %337 = vmatprep.subr.mxu0 0.0
    %338 = vmatpush2.msra.mxu0 0.0
    %339 = vmatprep.subr.mxu0 0.0
    %340 = vmatpush2.msra.mxu0 0.0
    %341 = vmatprep.subr.mxu0 0.0
    %342 = vmatpush2.msra.mxu0 0.0
    %343 = vmatprep.subr.mxu0 0.0
    %344 = vmatpush2.msra.mxu0 0.0
    %345 = vmatprep.subr.mxu0 0.0
    %346 = vmatpush2.msra.mxu0 0.0
    %347 = vmatprep.subr.mxu0 0.0
    %348 = vmatpush2.msra.mxu0 0.0
    %349 = vmatprep.subr.mxu0 0.0
    %350 = vmatpush2.msra.mxu0 0.0
    %351 = vmatprep.subr.mxu0 0.0
    %352 = vmatpush2.msra.mxu0 0.0
    %353 = vmatprep.subr.mxu0 0.0
    %354 = vmatpush2.msra.mxu0 0.0
    %355 = vmatprep.subr.mxu0 0.0
    %356 = vmatpush2.msra.mxu0 0.0
    %357 = vmatprep.subr.mxu0 0.0
    %358 = vmatpush2.msra.mxu0 0.0
    %359 = vmatprep.subr.mxu0 0.0
    %360 = vmatpush2.msra.mxu0 0.0
    %361 = vmatprep.subr.mxu0 0.0
    %362 = vmatpush2.msra.mxu0 0.0
    %363 = vmatprep.subr.mxu0 0.0
    %364 = vmatpush2.msra.mxu0 0.0
    %365 = vmatprep.subr.mxu0 0.0
    %366 = vmatpush2.msra.mxu0 0.0
    %367 = vmatprep.mubr.f32.mxu0 0.0
    %368 = vmatmul.mubr.f32.gmra.mxu0 %v224
    %v369 = vpop.f32.mrf.mxu0
    %v370 = vadd.f32 %v295, %v369
    %v371 = vpop.f32.mrf.mxu0
    %372 = vmatprep.mubr.f32.mxu0 0.0
    %373 = vmatmul.mubr.f32.gmra.mxu0 %v225
    %v374 = vpop.f32.mrf.mxu0
    %v375 = vadd.f32 %v300, %v374
    %v376 = vpop.f32.mrf.mxu0
    %377 = vdwg.mxu0
    %v378 = vadd.f32 %v370, 1e-05
    %v379 = vadd.f32 %v375, 1e-05
    %v380 = vrsqrt.pop %v378
    %v381 = vrsqrt.pop %v379
    %v382 = vmul.f32 %v219, %v380
    %v383 = vmul.f32 %v220, %v381
    %v384 = vld [vmem:[%s2] sm:$0x1]
    %v386 = vlaneseq
    %v387 = vshrl.u32 %v386, 7
    %v388 = vsub.s32 0, %v387
    %v389 = vrot.slane %v384, %v388
    %v391 = vmul.f32 %v382, %v389
    %v392 = vmul.f32 %v383, %v389
    %v393 = vld [vmem:[%s3] sm:$0x1]
    %v395 = vlaneseq
    %v396 = vshrl.u32 %v395, 7
    %v397 = vsub.s32 0, %v396
    %v398 = vrot.slane %v393, %v397
    %v400 = vadd.f32 %v391, %v398
    %v401 = vadd.f32 %v392, %v398
    %402 = vst [vmem:[#allocation7] sm:$0xff] %v400
    %403 = vst [vmem:[#allocation7 + $0x8] sm:$0xff] %v401
    // Predicated region
    $region26: #{tpu_custom_call.1} parent=1 // pred_check
      _
    $region27: #{tpu_custom_call.1} parent=1 // pred_check_branch
      %405 = sbr.rel (0) target = $region29
    $region28: #{tpu_custom_call.1} parent=1 // pred_region
      %s407 = ssub.s32 256, 256
      %408 = vsyncadd [#allocation4], %s407
      %s409 = sshll.u32 [#allocation7], 4
      %s410 = int_to_ptr.vmem [resolvable:$true] %s409
      %415 = dma.vmem_to_hbm [thread:$0]  %s410, 256, %s4, [#allocation4], 128, 128, 8
    $region29: #{tpu_custom_call.1} parent=1 // pred_fallthru
      _
    // Predicated region
    $region30: #{tpu_custom_call.1} parent=1 // pred_check
      _
    $region31: #{tpu_custom_call.1} parent=1 // pred_check_branch
      %417 = sbr.rel (0) target = $region33
    $region32: #{tpu_custom_call.1} parent=1 // pred_region
      %418 = dma.done [#allocation4], 256
    $region33: #{tpu_custom_call.1} parent=1 // pred_fallthru
      _
    %419 = vsyncpa [#allocation3], 1
    %420 = vsyncpa [#allocation6], 1
    %421 = vsyncpa [#allocation4], 1

</llo_original>
